<compile_context>
chip_gen: v6e
topology: v6e:2x2x1
jax: 0.10.0
libtpu: 0.0.40
codegen_flags: <defaults>
</compile_context>

<pallas_src>
import functools

import jax
import jax.numpy as jnp
from jax.experimental import pallas as pl
from jax.experimental.pallas import tpu as pltpu


def _round_up(n: int, m: int) -> int:
    return ((n + m - 1) // m) * m


def _vmem_limit_bytes() -> int:
    """Pick a scoped-VMEM limit safe for v5e/v6e (128 MiB) and v7x (64 MiB/TC)."""
    default_cap = 64 * 1024 * 1024  # conservative (v7x per-TC physical VMEM)
    try:
        info = pltpu.get_tpu_info()
        cap = int(getattr(info, "vmem_capacity_bytes", default_cap))
    except Exception:
        cap = default_cap
    return int(min((cap * 3) // 4, 96 * 1024 * 1024))


def _choose_tile_b(batch: int, L: int, L_pad: int, itemsize: int,
                   vmem_limit: int) -> int:
    if batch <= 8:
        return batch  # single full-extent block; no OOB rows at all
    # Per-row VMEM bytes:
    #   * BlockSpec double-buffers (1 input + 2 outputs, x.dtype): 6 * L * itemsize
    #   * padded f32 scratch row:                                   4 * L_pad
    #   * ~6 live f32 temporaries (x, xp, p, r, rolled tap, trend): 24 * L_pad
    per_row = 6 * L * itemsize + 28 * L_pad
    budget = (vmem_limit * 3) // 4
    cap = max(8, (budget // per_row) // 8 * 8)
    cap = min(cap, 2048)
    # Keep at least two grid blocks so v7x's two TensorCores both get work.
    two_blocks = _round_up((batch + 1) // 2, 8)
    return int(min(cap, two_blocks))


def _series_decomp_kernel(x_ref, trend_ref, seasonal_ref, xp_ref, *,
                          kernel_size: int):
    pad = kernel_size // 2
    L = x_ref.shape[-1]
    tb, Lp = xp_ref.shape

    x = x_ref[...].astype(jnp.float32)                   # (tb, L), single load

    # Zero-extended working copy; trailing zeros replace AvgPool1d's padding,
    # so no boundary masks are needed anywhere below.
    if L < Lp:
        xp_ref[:, L:] = jnp.zeros((tb, Lp - L), jnp.float32)
        xp_ref[:, :L] = x
    else:
        xp_ref[...] = x
    xp = xp_ref[...]                                      # (tb, Lp)

    def roll_left(a, s):                                  # a[(t + s) mod Lp]
        return pltpu.roll(a, shift=Lp - s, axis=1)

    # Cyclic sliding-window sum of length kernel_size via log-doubling:
    # r[t] = sum_{j=0}^{k-1} xp[(t + j) mod Lp]   with O(log k) rolls + adds.
    p, p_len = xp, 1
    r, r_len = None, 0
    kk = kernel_size
    while kk > 0:
        if kk & 1:
            if r is None:
                r, r_len = p, p_len
            else:
                r = r + roll_left(p, r_len)
                r_len = r_len + p_len
        kk >>= 1
        if kk > 0:
            p = p + roll_left(p, p_len)
            p_len *= 2

    # trend[t] = W[t - pad] / k ; the wrap-around lands on the trailing zero
    # columns (L_pad - L >= pad), reproducing AvgPool1d's zero padding exactly.
    w = pltpu.roll(r, shift=pad, axis=1) if pad > 0 else r
    trend = w * (1.0 / kernel_size)                       # count_include_pad=True
    if L < Lp:
        trend = trend[:, :L]

    trend_ref[...] = trend.astype(trend_ref.dtype)
    seasonal_ref[...] = (x - trend).astype(seasonal_ref.dtype)


def series_decomposition(x: jax.Array, kernel_size: int):
    """x: (B, L) float array. Returns (trend, seasonal), both (B, L)."""
    assert x.ndim == 2, "expected (batch, length) input"
    assert kernel_size >= 1 and kernel_size % 2 == 1, "odd kernel_size expected"
    B, L = x.shape
    pad = kernel_size // 2
    itemsize = jnp.dtype(x.dtype).itemsize

    # Lane-dense working width with >= pad trailing zero columns (mask-free
    # window sums) and >= kernel_size (all roll shifts stay inside (0, L_pad)).
    L_pad = _round_up(max(L + pad, kernel_size, 128), 128)

    vmem_limit = _vmem_limit_bytes()
    tile_b = _choose_tile_b(B, L, L_pad, itemsize, vmem_limit)
    grid = (pl.cdiv(B, tile_b),)

    kernel = functools.partial(_series_decomp_kernel, kernel_size=kernel_size)

    trend, seasonal = pl.pallas_call(
        kernel,
        grid=grid,
        in_specs=[pl.BlockSpec((tile_b, L), lambda i: (i, 0))],
        out_specs=(
            pl.BlockSpec((tile_b, L), lambda i: (i, 0)),
            pl.BlockSpec((tile_b, L), lambda i: (i, 0)),
        ),
        out_shape=(
            jax.ShapeDtypeStruct((B, L), x.dtype),
            jax.ShapeDtypeStruct((B, L), x.dtype),
        ),
        scratch_shapes=[pltpu.VMEM((tile_b, L_pad), jnp.float32)],
        compiler_params=pltpu.CompilerParams(
            dimension_semantics=("parallel",),
            vmem_limit_bytes=vmem_limit),
        cost_estimate=pl.CostEstimate(
            flops=int(B) * int(L_pad) * (2 * int(kernel_size).bit_length() + 3),
            transcendentals=0,
            bytes_accessed=3 * int(B) * int(L) * int(itemsize)),
    )(x)

    return trend, seasonal


def _reference(x, kernel_size):
    """Pure-JAX reference matching PyTorch AvgPool1d(stride=1, pad=k//2)."""
    pad = kernel_size // 2
    x_pad = jnp.pad(x, ((0, 0), (pad, pad)))
    L = x.shape[1]
    trend = sum(x_pad[:, j:j + L] for j in range(kernel_size)) / kernel_size
    return trend, x - trend


if __name__ == "__main__":
    key = jax.random.PRNGKey(0)
    B, L = 2, 16
    kernel_size = 5                     # odd, DLinear-style
    x = jax.random.normal(key, (B, L), dtype=jnp.float32)

    trend, seasonal = series_decomposition(x, kernel_size)
    trend = jax.block_until_ready(trend)
    seasonal = jax.block_until_ready(seasonal)

    t_ref, s_ref = _reference(x, kernel_size)
    assert jnp.allclose(trend, t_ref, atol=1e-5), "trend mismatch"
    assert jnp.allclose(seasonal, s_ref, atol=1e-5), "seasonal mismatch"
    assert jnp.allclose(trend + seasonal, x, atol=1e-5), "decomposition not exact"

    print("KERNEL_OK")
</pallas_src>

<mosaic_0001>
module attributes {stable_mosaic.version = 11 : i64} {
  func.func @_series_decomp_kernel(%arg0: i32, %arg1: memref<2x16xf32, #tpu.memory_space<vmem>>, %arg2: memref<2x16xf32, #tpu.memory_space<vmem>>, %arg3: memref<2x16xf32, #tpu.memory_space<vmem>>, %arg4: memref<2x128xf32, #tpu.memory_space<vmem>>) attributes {dimension_semantics = [#tpu.dimension_semantics<parallel>], iteration_bounds = array<i64: 1>, scalar_prefetch = 0 : i64, scratch_operands = 1 : i64, tpu.core_type = #tpu.core_type<tc>, window_params = [{transform_indices = @transform_0, window_bounds = array<i64: 2, 16>}, {transform_indices = @transform_1, window_bounds = array<i64: 2, 16>}, {transform_indices = @transform_2, window_bounds = array<i64: 2, 16>}]} {
    %c0 = arith.constant 0 : index
    %c0_0 = arith.constant 0 : index
    %0 = vector.load %arg1[%c0, %c0_0] : memref<2x16xf32, #tpu.memory_space<vmem>>, vector<2x16xf32>
    %cst = arith.constant 0.000000e+00 : f32
    %1 = vector.broadcast %cst : f32 to vector<2x112xf32>
    %c0_1 = arith.constant 0 : index
    %c16 = arith.constant 16 : index
    %2 = vector.load %arg4[%c0_1, %c16] : memref<2x128xf32, #tpu.memory_space<vmem>>, vector<2x112xf32>
    tpu.vector_store %arg4[%c0_1, %c16], %1 {strides = array<i32>} : memref<2x128xf32, #tpu.memory_space<vmem>>, vector<2x112xf32>,
    %c0_2 = arith.constant 0 : index
    %c0_3 = arith.constant 0 : index
    %3 = vector.load %arg4[%c0_2, %c0_3] : memref<2x128xf32, #tpu.memory_space<vmem>>, vector<2x16xf32>
    tpu.vector_store %arg4[%c0_2, %c0_3], %0 {strides = array<i32>} : memref<2x128xf32, #tpu.memory_space<vmem>>, vector<2x16xf32>,
    %c0_4 = arith.constant 0 : index
    %c0_5 = arith.constant 0 : index
    %4 = vector.load %arg4[%c0_4, %c0_5] : memref<2x128xf32, #tpu.memory_space<vmem>>, vector<2x128xf32>
    %c127_i32 = arith.constant 127 : i32
    %5 = tpu.dynamic_rotate %4 by %c127_i32 dim 1 : vector<2x128xf32>, i32 -> vector<2x128xf32>
    %6 = arith.addf %4, %5 : vector<2x128xf32>
    %c126_i32 = arith.constant 126 : i32
    %7 = tpu.dynamic_rotate %6 by %c126_i32 dim 1 : vector<2x128xf32>, i32 -> vector<2x128xf32>
    %8 = arith.addf %6, %7 : vector<2x128xf32>
    %c127_i32_6 = arith.constant 127 : i32
    %9 = tpu.dynamic_rotate %8 by %c127_i32_6 dim 1 : vector<2x128xf32>, i32 -> vector<2x128xf32>
    %10 = arith.addf %4, %9 : vector<2x128xf32>
    %c2_i32 = arith.constant 2 : i32
    %11 = tpu.dynamic_rotate %10 by %c2_i32 dim 1 : vector<2x128xf32>, i32 -> vector<2x128xf32>
    %cst_7 = arith.constant 2.000000e-01 : f32
    %12 = vector.broadcast %cst_7 : f32 to vector<2x128xf32>
    %13 = arith.mulf %11, %12 : vector<2x128xf32>
    %14 = vector.extract_strided_slice %13 {offsets = [0, 0], sizes = [2, 16], strides = [1, 1]} : vector<2x128xf32> to vector<2x16xf32>
    %c0_8 = arith.constant 0 : index
    %c0_9 = arith.constant 0 : index
    %15 = vector.load %arg2[%c0_8, %c0_9] : memref<2x16xf32, #tpu.memory_space<vmem>>, vector<2x16xf32>
    tpu.vector_store %arg2[%c0_8, %c0_9], %14 {strides = array<i32>} : memref<2x16xf32, #tpu.memory_space<vmem>>, vector<2x16xf32>,
    %16 = arith.subf %0, %14 : vector<2x16xf32>
    %c0_10 = arith.constant 0 : index
    %c0_11 = arith.constant 0 : index
    %17 = vector.load %arg3[%c0_10, %c0_11] : memref<2x16xf32, #tpu.memory_space<vmem>>, vector<2x16xf32>
    tpu.vector_store %arg3[%c0_10, %c0_11], %16 {strides = array<i32>} : memref<2x16xf32, #tpu.memory_space<vmem>>, vector<2x16xf32>,
    return
  }
  func.func @transform_0(%arg0: i32) -> (i32, i32) {
    %c0_i32 = arith.constant 0 : i32
    %c0_i32_0 = arith.constant 0 : i32
    return %arg0, %c0_i32 : i32, i32
  }
  func.func @transform_1(%arg0: i32) -> (i32, i32) {
    %c0_i32 = arith.constant 0 : i32
    %c0_i32_0 = arith.constant 0 : i32
    return %arg0, %c0_i32 : i32, i32
  }
  func.func @transform_2(%arg0: i32) -> (i32, i32) {
    %c0_i32 = arith.constant 0 : i32
    %c0_i32_0 = arith.constant 0 : i32
    return %arg0, %c0_i32 : i32, i32
  }
}

</mosaic_0001>

<llo_original>
// kernel: tpu_custom_call.1
$region0: #{tpu_custom_call.1}
  #allocation0 [shape = 'u32[]', space=smem, size = 0x4, offset = 0x4, fixed_abs, tag = 'smem constant byte address 0x4 - core index']
  #allocation1 [shape = 'u32[144,128]{1,0:T(1,128)}', space=vmem, size = 0x12000, scoped, tag = 'internal scratch']
  #allocation2 [shape = 'f32[2,128]{1,0:T(2,128)}', space=vmem, size = 0x400, scoped, tag = 'scratch operand']
  %s0 = inlined_call_operand.hbm [shape: f32[2,16], index: 0, kind: input, shape index: {}]
  %s1 = inlined_call_operand.hbm [shape: f32[2,16], index: 1, kind: output, shape index: {0}]
  %s2 = inlined_call_operand.hbm [shape: f32[2,16], index: 2, kind: output, shape index: {1}]
  %3 = xla_tuple %s1, %s2
  %s4 = sld [smem:[#allocation0]]
  $region26: #{tpu_custom_call.1} parent=0
    _
  %s6 = ssub.s32 1, %s4
  %s7 = scalar_select 0, %s6, %s4
  $region1: #{tpu_custom_call.1} parent=0
    #allocation3 [shape = 'u8[1024]{0}', space=vmem, size = 0x400, scoped, tag = 'input window, operand 0, single buffered']
    #allocation4 [shape = 's32[1]{0}', space=sflag, size = 0x4, scoped, tag = 'scoped memory for tpu_custom_call.1']
    #allocation5 [shape = 's32[1]{0}', space=sflag, size = 0x4, scoped, tag = 'scoped memory for tpu_custom_call.1']
    #allocation6 [shape = 'u8[1024]{0}', space=vmem, size = 0x400, scoped, tag = 'output window, operand 0, single buffered']
    #allocation7 [shape = 'u8[1024]{0}', space=vmem, size = 0x400, scoped, tag = 'output window, operand 1, single buffered']
    #allocation8 [shape = 's32[1]{0}', space=sflag, size = 0x4, scoped, tag = 'scoped memory for tpu_custom_call.1']
    %8 = vsyncpa [#allocation4], 0
    %9 = vsyncpa [#allocation5], 0
    %10 = vsyncpa [#allocation8], 0
    // Predicated region
    $region2: #{tpu_custom_call.1} parent=1 // pred_check
      _
    $region3: #{tpu_custom_call.1} parent=1 // pred_check_branch
      %12 = sbr.rel (0) target = $region5
    $region4: #{tpu_custom_call.1} parent=1 // pred_region
      %s14 = ssub.s32 32, 32
      %15 = vsyncadd [#allocation4], %s14
      %s17 = sshll.u32 [#allocation3], 4
      %s18 = int_to_ptr.vmem [resolvable:$true] %s17
      %20 = dma.hbm_to_vmem [thread:$0]  %s0, 32, %s18, [#allocation4]
    $region5: #{tpu_custom_call.1} parent=1 // pred_fallthru
      _
    // Predicated region
    $region6: #{tpu_custom_call.1} parent=1 // pred_check
      _
    $region7: #{tpu_custom_call.1} parent=1 // pred_check_branch
      %22 = sbr.rel (0) target = $region9
    $region8: #{tpu_custom_call.1} parent=1 // pred_region
      %23 = dma.done [#allocation4], 32
    $region9: #{tpu_custom_call.1} parent=1 // pred_fallthru
      _
    %v24 = vld [vmem:[#allocation3] sm:$0x3]
    %vm25 = vcmask 1041536
    %26 = vst.msk [vmem:[#allocation2] sm:$0x3] %vm25, 0.0
    %vm27 = vcmask 123904
    %28 = vst.msk [vmem:[#allocation2] sm:$0x3] %vm27, %v24
    %v29 = vld [vmem:[#allocation2] sm:$0x3]
    %30 = vrot.lane.b32.xlu0 %v29, 127
    %v31 = vpop.permute.xlu0 %30
    %v32 = vadd.f32 %v29, %v31
    %33 = vrot.lane.b32.xlu0 %v32, 126
    %v34 = vpop.permute.xlu0 %33
    %v35 = vadd.f32 %v32, %v34
    %36 = vrot.lane.b32.xlu0 %v35, 127
    %v37 = vpop.permute.xlu0 %36
    %v38 = vadd.f32 %v29, %v37
    %39 = vrot.lane.b32.xlu0 %v38, 2
    %v40 = vpop.permute.xlu0 %39
    %v41 = vmul.f32 %v40, 0.2
    %42 = vst.msk [vmem:[#allocation6] sm:$0x3] %vm27, %v41
    %v43 = vsub.f32 %v24, %v41
    %44 = vst.msk [vmem:[#allocation7] sm:$0x3] %vm27, %v43
    // Predicated region
    $region10: #{tpu_custom_call.1} parent=1 // pred_check
      _
    $region11: #{tpu_custom_call.1} parent=1 // pred_check_branch
      %46 = sbr.rel (0) target = $region13
    $region12: #{tpu_custom_call.1} parent=1 // pred_region
      %s48 = ssub.s32 32, 32
      %49 = vsyncadd [#allocation5], %s48
      %s51 = sshll.u32 [#allocation6], 4
      %s52 = int_to_ptr.vmem [resolvable:$true] %s51
      %54 = dma.vmem_to_hbm [thread:$0]  %s52, 32, %s1, [#allocation5]
    $region13: #{tpu_custom_call.1} parent=1 // pred_fallthru
      _
    // Predicated region
    $region14: #{tpu_custom_call.1} parent=1 // pred_check
      _
    $region15: #{tpu_custom_call.1} parent=1 // pred_check_branch
      %56 = sbr.rel (0) target = $region17
    $region16: #{tpu_custom_call.1} parent=1 // pred_region
      %s58 = ssub.s32 32, 32
      %59 = vsyncadd [#allocation8], %s58
      %s61 = sshll.u32 [#allocation7], 4
      %s62 = int_to_ptr.vmem [resolvable:$true] %s61
      %64 = dma.vmem_to_hbm [thread:$0]  %s62, 32, %s2, [#allocation8]
    $region17: #{tpu_custom_call.1} parent=1 // pred_fallthru
      _
    // Predicated region
    $region18: #{tpu_custom_call.1} parent=1 // pred_check
      _
    $region19: #{tpu_custom_call.1} parent=1 // pred_check_branch
      %66 = sbr.rel (0) target = $region21
    $region20: #{tpu_custom_call.1} parent=1 // pred_region
      %67 = dma.done [#allocation5], 32
    $region21: #{tpu_custom_call.1} parent=1 // pred_fallthru
      _
    // Predicated region
    $region22: #{tpu_custom_call.1} parent=1 // pred_check
      _
    $region23: #{tpu_custom_call.1} parent=1 // pred_check_branch
      %69 = sbr.rel (0) target = $region25
    $region24: #{tpu_custom_call.1} parent=1 // pred_region
      %70 = dma.done [#allocation8], 32
    $region25: #{tpu_custom_call.1} parent=1 // pred_fallthru
      _
    %71 = vsyncpa [#allocation4], 1
    %72 = vsyncpa [#allocation5], 1
    %73 = vsyncpa [#allocation8], 1

</llo_original>
